<compile_context>
chip_gen: v6e
topology: v6e:2x2x1
jax: 0.10.0
libtpu: 0.0.40
codegen_flags: <defaults>
</compile_context>

<pallas_src>
import functools

import jax
import jax.numpy as jnp
from jax.experimental import pallas as pl
from jax.experimental.pallas import tpu as pltpu


def _round_up(x, m):
    return ((x + m - 1) // m) * m


def _laplacian_kernel_regression_kernel(x_ref, ct_ref, csq_ref, w_ref, o_ref,
                                        xsq_ref, *, neg_inv_bw):
    """One (batch-tile, center-tile) step of pred = exp(-dist/L) @ weight."""
    j = pl.program_id(1)

    @pl.when(j == 0)
    def _():
        # Output block is resident across the j (reduction) axis: init here.
        o_ref[...] = jnp.zeros_like(o_ref)
        # ||x||^2 is identical for every center tile of this batch tile.
        x_f32 = x_ref[...].astype(jnp.float32)
        xsq_ref[...] = jnp.sum(x_f32 * x_f32, axis=-1, keepdims=True)

    x = x_ref[...]                                   # (tb, D)  native dtype (MXU)
    c_t = ct_ref[...]                                # (D, tc)  native dtype (MXU)
    w = w_ref[...]                                   # (tc, Yp)

    # x @ centers^T as a plain NN matmul (centers pre-transposed on the host).
    xc = jnp.dot(x, c_t, preferred_element_type=jnp.float32)   # (tb, tc) f32

    # ||c||^2 was precomputed once in the wrapper -> just a (1, tc) load here.
    d2 = jnp.maximum(xsq_ref[...] + csq_ref[...] - 2.0 * xc, 0.0)
    dist = jnp.sqrt(d2)
    kmat = jnp.exp(dist * neg_inv_bw)                # divide folded at trace time

    # Second matmul in the weight's dtype (bf16 stays bf16 -> full-rate MXU),
    # accumulating in f32 directly into the resident output block.
    kmat_op = kmat if w.dtype == jnp.float32 else kmat.astype(w.dtype)
    o_ref[...] += jnp.dot(kmat_op, w, preferred_element_type=jnp.float32)


def kernel_model_forward(batch, centers, weight, *, bandwidth=10.0,
                         tile_b=256, tile_c=512, use_bf16_matmul=False):
    """pred = LaplacianKernel(batch, centers) @ weight  (fused Pallas kernel)."""
    B, D = batch.shape
    C, Dc = centers.shape
    Cw, Y = weight.shape
    assert D == Dc and C == Cw

    # Lane-dense output: pad Y up to a multiple of 128.  Zero weight columns
    # produce zero prediction columns, sliced off afterwards.
    Y_pad = _round_up(Y, 128)

    # --- batch tiling -------------------------------------------------------
    tile_b = _round_up(tile_b, 8)
    B8 = _round_up(B, 8)
    tb = min(tile_b, B8)
    # Guarantee >= 2 iterations on the parallel (i) axis when possible so the
    # second TensorCore on v7x isn't idle (no-op cost on single-TC chips).
    if B8 // tb < 2 and B8 >= 16:
        tb = _round_up((B8 + 1) // 2, 8)
    B_pad = _round_up(B, tb)

    # --- center tiling (lane-aligned: tc is a multiple of 128) ---------------
    tile_c = _round_up(tile_c, 128)
    C128 = _round_up(C, 128)
    tc = min(tile_c, C128)
    n_c_tiles = pl.cdiv(C128, tc)
    tc = _round_up(pl.cdiv(C128, n_c_tiles), 128)    # balance tiles, less padding
    C_pad = tc * n_c_tiles

    # --- host-side padding / preprocessing -----------------------------------
    x = batch if B_pad == B else jnp.pad(batch, ((0, B_pad - B), (0, 0)))

    cen = centers if C_pad == C else jnp.pad(centers, ((0, C_pad - C), (0, 0)))
    # One-time transpose: kernel sees a lane-dense (D, tc) centers tile.
    c_t = jnp.transpose(cen)                              # (D, C_pad)
    # Per-center squared norms, computed ONCE (padded centers are zero).
    c_f32 = cen.astype(jnp.float32)
    c_sq = jnp.sum(c_f32 * c_f32, axis=-1)[None, :]       # (1, C_pad) f32

    w = weight
    if use_bf16_matmul and w.dtype == jnp.float32:
        # Opt-in: full-rate bf16 MXU for the second matmul (f32 accumulation).
        w = w.astype(jnp.bfloat16)
    if C_pad != C:
        w = jnp.pad(w, ((0, C_pad - C), (0, 0)))          # zero rows -> contribute 0
    if Y_pad != Y:
        w = jnp.pad(w, ((0, 0), (0, Y_pad - Y)))

    # --- explicit VMEM budget -------------------------------------------------
    bpe_x = jnp.dtype(x.dtype).itemsize
    bpe_w = jnp.dtype(w.dtype).itemsize
    vmem_needed = (
        2 * (tb * D * bpe_x            # batch tile (double-buffered)
             + D * tc * bpe_x          # centers^T tile
             + tc * 4                  # ||c||^2 tile
             + tc * Y_pad * bpe_w)     # weight tile
        + 2 * tb * Y_pad * 4           # resident / pipelined output block
        + tb * 4                       # ||x||^2 scratch
        + 4 * tb * tc * 4              # xc / d2 / dist / kmat f32 temporaries
        + tb * tc * 2                  # possible bf16 cast of kmat
    )
    try:
        phys_vmem = pltpu.get_tpu_info().vmem_capacity_bytes
    except Exception:
        phys_vmem = 64 * 1024 * 1024   # conservative (v7x per-TC VMEM)
    vmem_limit = int(min(max(int(1.5 * vmem_needed), 16 * 1024 * 1024),
                         int(0.75 * phys_vmem)))

    kernel = functools.partial(_laplacian_kernel_regression_kernel,
                               neg_inv_bw=-1.0 / float(bandwidth))

    out = pl.pallas_call(
        kernel,
        out_shape=jax.ShapeDtypeStruct((B_pad, Y_pad), jnp.float32),
        grid_spec=pltpu.PrefetchScalarGridSpec(
            num_scalar_prefetch=0,
            grid=(B_pad // tb, C_pad // tc),
            in_specs=[
                pl.BlockSpec((tb, D), lambda i, j: (i, 0)),       # batch tile
                pl.BlockSpec((D, tc), lambda i, j: (0, j)),       # centers^T tile
                pl.BlockSpec((1, tc), lambda i, j: (0, j)),       # ||c||^2 tile
                pl.BlockSpec((tc, Y_pad), lambda i, j: (j, 0)),   # weight tile
            ],
            out_specs=pl.BlockSpec((tb, Y_pad), lambda i, j: (i, 0)),
            scratch_shapes=[pltpu.VMEM((tb, 1), jnp.float32)],    # ||x||^2
        ),
        compiler_params=pltpu.CompilerParams(
            dimension_semantics=("parallel", "arbitrary"),
            vmem_limit_bytes=vmem_limit),
    )(x, c_t, c_sq, w)

    return out[:B, :Y]


def _reference_forward(batch, centers, weight, bandwidth=10.0):
    d2 = (jnp.sum(batch**2, -1, keepdims=True)
          + jnp.sum(centers**2, -1)[None, :]
          - 2.0 * batch @ centers.T)
    dist = jnp.sqrt(jnp.maximum(d2, 0.0))
    kmat = jnp.exp(-dist / bandwidth)
    return kmat @ weight


# TODO(synk): the NMF-based fit() loop, kernel-matrix caching and evaluate()
# metrics are host-side training orchestration, not part of forward(); only
# forward (kernel_fn(batch, centers) @ weight) is implemented as a kernel.

if __name__ == "__main__":
    key = jax.random.PRNGKey(0)
    k1, k2, k3 = jax.random.split(key, 3)

    B, D, C, Y = 128, 32, 256, 16          # batch, x_dim, n_centers, y_dim
    batch = jax.random.normal(k1, (B, D), dtype=jnp.float32)
    centers = jax.random.normal(k2, (C, D), dtype=jnp.float32)
    # Module __init__ sets weight = zeros(n_centers, y_dim); forward() also
    # accepts an explicit weight — use a deterministic nonzero one so the
    # output is non-trivial.
    weight = jax.random.normal(k3, (C, Y), dtype=jnp.float32) * 0.1

    ref = _reference_forward(batch, centers, weight, bandwidth=10.0)

    # Default f32 path.
    pred = kernel_model_forward(batch, centers, weight, bandwidth=10.0)
    pred = jax.block_until_ready(pred)
    assert pred.shape == (B, Y)
    assert jnp.allclose(pred, ref, atol=1e-4, rtol=1e-4), "mismatch vs reference"

    # Opt-in bf16 second-matmul path (looser tolerance; kmat in (0, 1]).
    pred_bf16 = kernel_model_forward(batch, centers, weight, bandwidth=10.0,
                                     use_bf16_matmul=True)
    pred_bf16 = jax.block_until_ready(pred_bf16)
    max_ref = float(jnp.max(jnp.abs(ref)))
    assert float(jnp.max(jnp.abs(pred_bf16 - ref))) < 0.05 * (1.0 + max_ref), \
        "bf16 path mismatch vs reference"

    print("KERNEL_OK")
</pallas_src>

<mosaic_0001>
module attributes {stable_mosaic.version = 11 : i64} {
  func.func @_laplacian_kernel_regression_kernel(%arg0: i32, %arg1: i32, %arg2: memref<64x32xf32, #tpu.memory_space<vmem>>, %arg3: memref<32x256xf32, #tpu.memory_space<vmem>>, %arg4: memref<1x256xf32, #tpu.memory_space<vmem>>, %arg5: memref<256x128xf32, #tpu.memory_space<vmem>>, %arg6: memref<64x128xf32, #tpu.memory_space<vmem>>, %arg7: memref<64x1xf32, #tpu.memory_space<vmem>>) attributes {dimension_semantics = [#tpu.dimension_semantics<parallel>, #tpu.dimension_semantics<arbitrary>], iteration_bounds = array<i64: 2, 1>, scalar_prefetch = 0 : i64, scratch_operands = 1 : i64, tpu.core_type = #tpu.core_type<tc>, window_params = [{transform_indices = @transform_0, window_bounds = array<i64: 64, 32>}, {transform_indices = @transform_1, window_bounds = array<i64: 32, 256>}, {transform_indices = @transform_2, window_bounds = array<i64: 1, 256>}, {transform_indices = @transform_3, window_bounds = array<i64: 256, 128>}, {transform_indices = @transform_4, window_bounds = array<i64: 64, 128>}]} {
    %c0_i32 = arith.constant 0 : i32
    %0 = arith.cmpi eq, %arg1, %c0_i32 : i32
    %1 = arith.extui %0 : i1 to i32
    %c0_i32_0 = arith.constant 0 : i32
    %2 = arith.cmpi ne, %1, %c0_i32_0 : i32
    scf.if %2 {
      %cst_18 = arith.constant 0.000000e+00 : f32
      %25 = vector.broadcast %cst_18 : f32 to vector<64x128xf32>
      %c0_19 = arith.constant 0 : index
      %c0_20 = arith.constant 0 : index
      %26 = vector.load %arg6[%c0_19, %c0_20] : memref<64x128xf32, #tpu.memory_space<vmem>>, vector<64x128xf32>
      tpu.vector_store %arg6[%c0_19, %c0_20], %25 {strides = array<i32>} : memref<64x128xf32, #tpu.memory_space<vmem>>, vector<64x128xf32>,
      %c0_21 = arith.constant 0 : index
      %c0_22 = arith.constant 0 : index
      %27 = vector.load %arg2[%c0_21, %c0_22] : memref<64x32xf32, #tpu.memory_space<vmem>>, vector<64x32xf32>
      %28 = arith.mulf %27, %27 : vector<64x32xf32>
      %cst_23 = arith.constant dense<0.000000e+00> : vector<64xf32>
      %29 = vector.multi_reduction <add>, %28, %cst_23 [1] : vector<64x32xf32> to vector<64xf32>
      %30 = vector.shape_cast %29 : vector<64xf32> to vector<64x1xf32>
      %c0_24 = arith.constant 0 : index
      %c0_25 = arith.constant 0 : index
      %31 = vector.load %arg7[%c0_24, %c0_25] : memref<64x1xf32, #tpu.memory_space<vmem>>, vector<64x1xf32>
      tpu.vector_store %arg7[%c0_24, %c0_25], %30 {strides = array<i32>} : memref<64x1xf32, #tpu.memory_space<vmem>>, vector<64x1xf32>,
    } else {
    }
    %c0 = arith.constant 0 : index
    %c0_1 = arith.constant 0 : index
    %3 = vector.load %arg2[%c0, %c0_1] : memref<64x32xf32, #tpu.memory_space<vmem>>, vector<64x32xf32>
    %c0_2 = arith.constant 0 : index
    %c0_3 = arith.constant 0 : index
    %4 = vector.load %arg3[%c0_2, %c0_3] : memref<32x256xf32, #tpu.memory_space<vmem>>, vector<32x256xf32>
    %c0_4 = arith.constant 0 : index
    %c0_5 = arith.constant 0 : index
    %5 = vector.load %arg5[%c0_4, %c0_5] : memref<256x128xf32, #tpu.memory_space<vmem>>, vector<256x128xf32>
    %cst = arith.constant dense<0.000000e+00> : vector<64x256xf32>
    %6 = tpu.matmul %3, %4, %cst {dimension_numbers = #tpu.dot_dimension_numbers<[1], [0], [0], [1], [0, 0, 1, 1], [], []>} : vector<64x32xf32>, vector<32x256xf32>, vector<64x256xf32> -> vector<64x256xf32>
    %c0_6 = arith.constant 0 : index
    %c0_7 = arith.constant 0 : index
    %7 = vector.load %arg7[%c0_6, %c0_7] : memref<64x1xf32, #tpu.memory_space<vmem>>, vector<64x1xf32>
    %c0_8 = arith.constant 0 : index
    %c0_9 = arith.constant 0 : index
    %8 = vector.load %arg4[%c0_8, %c0_9] : memref<1x256xf32, #tpu.memory_space<vmem>>, vector<1x256xf32>
    %9 = vector.broadcast %7 : vector<64x1xf32> to vector<64x256xf32>
    %10 = vector.broadcast %8 : vector<1x256xf32> to vector<64x256xf32>
    %11 = arith.addf %9, %10 : vector<64x256xf32>
    %cst_10 = arith.constant 2.000000e+00 : f32
    %12 = vector.broadcast %cst_10 : f32 to vector<64x256xf32>
    %13 = arith.mulf %12, %6 : vector<64x256xf32>
    %14 = arith.subf %11, %13 : vector<64x256xf32>
    %cst_11 = arith.constant 0.000000e+00 : f32
    %15 = vector.broadcast %cst_11 : f32 to vector<64x256xf32>
    %16 = arith.maximumf %14, %15 : vector<64x256xf32>
    %17 = math.sqrt %16 : vector<64x256xf32>
    %cst_12 = arith.constant -1.000000e-01 : f32
    %18 = vector.broadcast %cst_12 : f32 to vector<64x256xf32>
    %19 = arith.mulf %17, %18 : vector<64x256xf32>
    %20 = math.exp %19 : vector<64x256xf32>
    %c0_13 = arith.constant 0 : index
    %c0_14 = arith.constant 0 : index
    %21 = vector.load %arg6[%c0_13, %c0_14] : memref<64x128xf32, #tpu.memory_space<vmem>>, vector<64x128xf32>
    %cst_15 = arith.constant dense<0.000000e+00> : vector<64x128xf32>
    %22 = tpu.matmul %20, %5, %cst_15 {dimension_numbers = #tpu.dot_dimension_numbers<[1], [0], [0], [1], [0, 0, 1, 1], [], []>} : vector<64x256xf32>, vector<256x128xf32>, vector<64x128xf32> -> vector<64x128xf32>
    %23 = arith.addf %21, %22 : vector<64x128xf32>
    %c0_16 = arith.constant 0 : index
    %c0_17 = arith.constant 0 : index
    %24 = vector.load %arg6[%c0_16, %c0_17] : memref<64x128xf32, #tpu.memory_space<vmem>>, vector<64x128xf32>
    tpu.vector_store %arg6[%c0_16, %c0_17], %23 {strides = array<i32>} : memref<64x128xf32, #tpu.memory_space<vmem>>, vector<64x128xf32>,
    return
  }
  func.func @transform_0(%arg0: i32, %arg1: i32) -> (i32, i32) {
    %c0_i32 = arith.constant 0 : i32
    %c0_i32_0 = arith.constant 0 : i32
    return %arg0, %c0_i32 : i32, i32
  }
  func.func @transform_1(%arg0: i32, %arg1: i32) -> (i32, i32) {
    %c0_i32 = arith.constant 0 : i32
    %c0_i32_0 = arith.constant 0 : i32
    return %c0_i32, %arg1 : i32, i32
  }
  func.func @transform_2(%arg0: i32, %arg1: i32) -> (i32, i32) {
    %c0_i32 = arith.constant 0 : i32
    %c0_i32_0 = arith.constant 0 : i32
    return %c0_i32, %arg1 : i32, i32
  }
  func.func @transform_3(%arg0: i32, %arg1: i32) -> (i32, i32) {
    %c0_i32 = arith.constant 0 : i32
    %c0_i32_0 = arith.constant 0 : i32
    return %arg1, %c0_i32 : i32, i32
  }
  func.func @transform_4(%arg0: i32, %arg1: i32) -> (i32, i32) {
    %c0_i32 = arith.constant 0 : i32
    %c0_i32_0 = arith.constant 0 : i32
    return %arg0, %c0_i32 : i32, i32
  }
}

</mosaic_0001>

<llo_original>
// kernel: tpu_custom_call.1
$region0: #{tpu_custom_call.1}
  #allocation0 [shape = 'u32[]', space=smem, size = 0x4, offset = 0x4, fixed_abs, tag = 'smem constant byte address 0x4 - core index']
  #allocation1 [shape = 'u32[144,128]{1,0:T(1,128)}', space=vmem, size = 0x12000, scoped, tag = 'internal scratch']
  #allocation2 [shape = 'f32[64,1]{1,0:T(8,128)}', space=vmem, size = 0x8000, scoped, tag = 'scratch operand']
  %s0 = inlined_call_operand.vmem [shape: f32[128,32], index: 0, kind: input, shape index: {}]
  %s1 = inlined_call_operand.vmem [shape: f32[32,256], index: 1, kind: input, shape index: {}]
  %s2 = inlined_call_operand.vmem [shape: f32[1,256], index: 2, kind: input, shape index: {}]
  %s3 = inlined_call_operand.hbm [shape: f32[256,128], index: 3, kind: input, shape index: {}]
  %s4 = inlined_call_operand.hbm [shape: f32[128,128], index: 4, kind: output, shape index: {}]
  %s5 = sld [smem:[#allocation0]]
  $region57: #{tpu_custom_call.1} parent=0
    _
  %s7 = ssub.s32 1, %s5
  %s8 = scalar_select 0, %s7, %s5
  $region1: #{tpu_custom_call.1} parent=0
    #allocation3 [shape = 'u8[131072]{0}', space=vmem, size = 0x20000, scoped, tag = 'input window, operand 3, single buffered']
    #allocation4 [shape = 's32[2]{0}', space=sflag, size = 0x8, scoped, tag = 'scoped memory for tpu_custom_call.1']
    #allocation5 [shape = 's32[2]{0}', space=sflag, size = 0x8, scoped, tag = 'scoped memory for tpu_custom_call.1']
    #allocation6 [shape = 'u8[65536]{0}', space=vmem, size = 0x10000, scoped, tag = 'output window, operand 0']
    %9 = vsyncpa [#allocation4], 0
    %10 = vsyncpa [#allocation5], 0
    %s11 = scalar_lea.sflag [#allocation5], 1
    %12 = vsyncpa %s11, 0
    loop: start=0, step=1, limit=4
    $region2: #{tpu_custom_call.1} parent=1 // loop_pre_header
      _
    $region3: #{tpu_custom_call.1} parent=1 // loop_header
      %s14 = sphi 0, %s18
      %p15 = scmp.ge.s32.totalorder %s14, 4
      %s21 = sphi 0, %s33
      %s22 = sphi 0, %s29
      %s23 = sphi 0, %s21
      %s24 = sphi 0, %s22
      %s25 = sphi 0, %s23
      %s26 = sphi 0, %s24
      %s36 = sphi 0, %s38
      %s39 = sphi 0, %s36
      %s40 = sphi 0, %s39
      %s56 = sphi 0, %s40
      %s62 = sphi 0, %s64
      %s65 = sphi 0, %s62
      %s66 = sphi 0, %s65
      %s82 = sphi 0, %s66
      %s88 = sphi 0, %s90
      %s91 = sphi 0, %s88
      %s92 = sphi 0, %s91
      %s108 = sphi 0, %s92
      %s114 = sphi 0, %s116
      %s117 = sphi 0, %s114
      %s118 = sphi 0, %s117
      %s134 = sphi 0, %s118
      %s140 = sphi 0, %s142
      %s143 = sphi 0, %s140
      %s144 = sphi 0, %s143
      %s160 = sphi 0, %s144
    $region4: #{tpu_custom_call.1} parent=1 // loop_header_branch
      %17 = sbr.rel (%p15) target = $region8
    $region5: #{tpu_custom_call.1} parent=1 // loop_body
      %s19 = ssub.s32 %s14, 1
      %s20 = ssub.s32 %s14, 2
      %s27 = sadd.s32 1, %s22
      %p28 = scmp.ge.s32.totalorder %s27, 1
      %s29 = scalar_select %p28, 0, %s27
      %s30 = sadd.s32 1, %s21
      %s31 = scalar_select %p28, %s30, %s21
      %p32 = scmp.ge.s32.totalorder %s31, 2
      %s33 = scalar_select %p32, 0, %s31
      %s34 = ssub.s32 %s21, %s33
      %p35 = scmp.eq.s32.totalorder %s34, 0
      %s37 = sadd.s32 %s36, 1
      %s38 = scalar_select %p35, %s36, %s37
      %p41 = pneg %p35
      %p42 = scmp.eq.s32.totalorder %s14, 1
      %p43 = por %p41, %p42
      %p44 = scmp.ne.s32.totalorder %s36, %s39
      %p45 = scmp.eq.s32.totalorder %s14, 0
      %p46 = por %p44, %p45
      %p47 = scmp.ne.s32.totalorder %s36, %s39
      %p48 = scmp.eq.s32.totalorder %s19, 1
      %p49 = por %p47, %p48
      %p50 = scmp.ne.s32.totalorder %s39, %s40
      %p51 = scmp.eq.s32.totalorder %s19, 0
      %p52 = por %p50, %p51
      %p53 = scmp.ne.s32.totalorder %s39, %s40
      %p54 = scmp.eq.s32.totalorder %s20, 1
      %p55 = por %p53, %p54
      %p57 = scmp.ne.s32.totalorder %s40, %s56
      %p58 = scmp.eq.s32.totalorder %s20, 0
      %p59 = por %p57, %p58
      %s60 = ssub.s32 %s22, %s29
      %p61 = scmp.eq.s32.totalorder %s60, 0
      %s63 = sadd.s32 %s62, 1
      %s64 = scalar_select %p61, %s62, %s63
      %p67 = pneg %p61
      %p68 = scmp.eq.s32.totalorder %s14, 1
      %p69 = por %p67, %p68
      %p70 = scmp.ne.s32.totalorder %s62, %s65
      %p71 = scmp.eq.s32.totalorder %s14, 0
      %p72 = por %p70, %p71
      %p73 = scmp.ne.s32.totalorder %s62, %s65
      %p74 = scmp.eq.s32.totalorder %s19, 1
      %p75 = por %p73, %p74
      %p76 = scmp.ne.s32.totalorder %s65, %s66
      %p77 = scmp.eq.s32.totalorder %s19, 0
      %p78 = por %p76, %p77
      %p79 = scmp.ne.s32.totalorder %s65, %s66
      %p80 = scmp.eq.s32.totalorder %s20, 1
      %p81 = por %p79, %p80
      %p83 = scmp.ne.s32.totalorder %s66, %s82
      %p84 = scmp.eq.s32.totalorder %s20, 0
      %p85 = por %p83, %p84
      %s86 = ssub.s32 %s22, %s29
      %p87 = scmp.eq.s32.totalorder %s86, 0
      %s89 = sadd.s32 %s88, 1
      %s90 = scalar_select %p87, %s88, %s89
      %p93 = pneg %p87
      %p94 = scmp.eq.s32.totalorder %s14, 1
      %p95 = por %p93, %p94
      %p96 = scmp.ne.s32.totalorder %s88, %s91
      %p97 = scmp.eq.s32.totalorder %s14, 0
      %p98 = por %p96, %p97
      %p99 = scmp.ne.s32.totalorder %s88, %s91
      %p100 = scmp.eq.s32.totalorder %s19, 1
      %p101 = por %p99, %p100
      %p102 = scmp.ne.s32.totalorder %s91, %s92
      %p103 = scmp.eq.s32.totalorder %s19, 0
      %p104 = por %p102, %p103
      %p105 = scmp.ne.s32.totalorder %s91, %s92
      %p106 = scmp.eq.s32.totalorder %s20, 1
      %p107 = por %p105, %p106
      %p109 = scmp.ne.s32.totalorder %s92, %s108
      %p110 = scmp.eq.s32.totalorder %s20, 0
      %p111 = por %p109, %p110
      %s112 = ssub.s32 %s22, %s29
      %p113 = scmp.eq.s32.totalorder %s112, 0
      %s115 = sadd.s32 %s114, 1
      %s116 = scalar_select %p113, %s114, %s115
      %p119 = pneg %p113
      %p120 = scmp.eq.s32.totalorder %s14, 1
      %p121 = por %p119, %p120
      %p122 = scmp.ne.s32.totalorder %s114, %s117
      %p123 = scmp.eq.s32.totalorder %s14, 0
      %p124 = por %p122, %p123
      %p125 = scmp.ne.s32.totalorder %s114, %s117
      %p126 = scmp.eq.s32.totalorder %s19, 1
      %p127 = por %p125, %p126
      %p128 = scmp.ne.s32.totalorder %s117, %s118
      %p129 = scmp.eq.s32.totalorder %s19, 0
      %p130 = por %p128, %p129
      %p131 = scmp.ne.s32.totalorder %s117, %s118
      %p132 = scmp.eq.s32.totalorder %s20, 1
      %p133 = por %p131, %p132
      %p135 = scmp.ne.s32.totalorder %s118, %s134
      %p136 = scmp.eq.s32.totalorder %s20, 0
      %p137 = por %p135, %p136
      %s138 = ssub.s32 %s21, %s33
      %p139 = scmp.eq.s32.totalorder %s138, 0
      %s141 = sadd.s32 %s140, 1
      %s142 = scalar_select %p139, %s140, %s141
      %p145 = pneg %p139
      %p146 = scmp.eq.s32.totalorder %s14, 1
      %p147 = por %p145, %p146
      %p148 = scmp.ne.s32.totalorder %s140, %s143
      %p149 = scmp.eq.s32.totalorder %s14, 0
      %p150 = por %p148, %p149
      %p151 = scmp.ne.s32.totalorder %s140, %s143
      %p152 = scmp.eq.s32.totalorder %s19, 1
      %p153 = por %p151, %p152
      %p154 = scmp.ne.s32.totalorder %s143, %s144
      %p155 = scmp.eq.s32.totalorder %s19, 0
      %p156 = por %p154, %p155
      %p157 = scmp.ne.s32.totalorder %s143, %s144
      %p158 = scmp.eq.s32.totalorder %s20, 1
      %p159 = por %p157, %p158
      %p161 = scmp.ne.s32.totalorder %s144, %s160
      %p162 = scmp.eq.s32.totalorder %s20, 0
      %p163 = por %p161, %p162
      %p164 = scmp.le.s32.totalorder 1, %s14
      %p165 = scmp.lt.s32.totalorder %s14, 3
      %p166 = pnand %p164, %p165
      %p167 = pneg %p166
      // Predicated region
      $region9: #{tpu_custom_call.1} parent=5 // pred_check
        _
      $region10: #{tpu_custom_call.1} parent=5 // pred_check_branch
        %169 = sbr.rel (%p166) target = $region12
      $region11: #{tpu_custom_call.1} parent=5 // pred_region
        %s170 = ssub.s32 %s14, 1
        // Predicated region
        $region13: #{tpu_custom_call.1} parent=11 // pred_check
          %p171 = pneg %p78
        $region14: #{tpu_custom_call.1} parent=11 // pred_check_branch
          %173 = sbr.rel (%p171) target = $region16
        $region15: #{tpu_custom_call.1} parent=11 // pred_region
          %s174 = smul.u32 2, %s24
          %p175 = scmp.lt.s32.totalorder %s174, 1
          %s176 = scalar_select %p175, %s174, 1
          %s177 = smul.addr %s176, 8
          %s178 = scalar_lea.vmem %s1, %s177
          %s179 = smul.u32 2, %s24
        $region16: #{tpu_custom_call.1} parent=11 // pred_fallthru
          _
        // Predicated region
        $region17: #{tpu_custom_call.1} parent=11 // pred_check
          %p180 = pneg %p104
        $region18: #{tpu_custom_call.1} parent=11 // pred_check_branch
          %182 = sbr.rel (%p180) target = $region20
        $region19: #{tpu_custom_call.1} parent=11 // pred_region
          %s183 = smul.u32 2, %s24
          %p184 = scmp.lt.s32.totalorder %s183, 1
          %s185 = scalar_select %p184, %s183, 1
          %s186 = scalar_lea.vmem %s2, %s185
          %s187 = smul.u32 2, %s24
        $region20: #{tpu_custom_call.1} parent=11 // pred_fallthru
          _
        // Predicated region
        $region21: #{tpu_custom_call.1} parent=11 // pred_check
          %p188 = pneg %p130
        $region22: #{tpu_custom_call.1} parent=11 // pred_check_branch
          %190 = sbr.rel (%p188) target = $region24
        $region23: #{tpu_custom_call.1} parent=11 // pred_region
          %s191 = smul.u32 32, %s24
          %s193 = ssub.s32 4096, 4096
          %194 = vsyncadd [#allocation4], %s193
          %s195 = smul.addr %s191, 128
          %s196 = scalar_lea.hbm %s3, %s195
          %s197 = sshll.u32 [#allocation3], 4
          %s198 = int_to_ptr.vmem [resolvable:$true] %s197
          %203 = dma.hbm_to_vmem [thread:$0]  %s196, 4096, %s198, [#allocation4], 128, 128, 8
        $region24: #{tpu_custom_call.1} parent=11 // pred_fallthru
          _
      $region12: #{tpu_custom_call.1} parent=5 // pred_fallthru
        _
      %p204 = scmp.lt.s32.totalorder %s14, 2
      // Predicated region
      $region25: #{tpu_custom_call.1} parent=5 // pred_check
        %p205 = pneg %p204
      $region26: #{tpu_custom_call.1} parent=5 // pred_check_branch
        %207 = sbr.rel (%p205) target = $region28
      $region27: #{tpu_custom_call.1} parent=5 // pred_region
        // Predicated region
        $region29: #{tpu_custom_call.1} parent=27 // pred_check
          %p208 = pneg %p46
        $region30: #{tpu_custom_call.1} parent=27 // pred_check_branch
          %210 = sbr.rel (%p208) target = $region32
        $region31: #{tpu_custom_call.1} parent=27 // pred_region
          %s211 = smul.u32 8, %s21
          %p212 = scmp.lt.s32.totalorder %s211, 15
          %s213 = scalar_select %p212, %s211, 15
          %s214 = smul.addr %s213, 8
          %s215 = scalar_lea.vmem %s0, %s214
          %s216 = smul.u32 8, %s21
        $region32: #{tpu_custom_call.1} parent=27 // pred_fallthru
          _
      $region28: #{tpu_custom_call.1} parent=5 // pred_fallthru
        _
      %p217 = scmp.le.s32.totalorder 1, %s14
      %p218 = scmp.lt.s32.totalorder %s14, 3
      %p219 = pnand %p217, %p218
      %p220 = pneg %p219
      // Predicated region
      $region33: #{tpu_custom_call.1} parent=5 // pred_check
        _
      $region34: #{tpu_custom_call.1} parent=5 // pred_check_branch
        %222 = sbr.rel (%p219) target = $region36
      $region35: #{tpu_custom_call.1} parent=5 // pred_region
        %s223 = ssub.s32 %s14, 1
        // Predicated region
        $region37: #{tpu_custom_call.1} parent=35 // pred_check
          %p224 = pneg %p130
        $region38: #{tpu_custom_call.1} parent=35 // pred_check_branch
          %226 = sbr.rel (%p224) target = $region40
        $region39: #{tpu_custom_call.1} parent=35 // pred_region
          %227 = dma.done [#allocation4], 4096
        $region40: #{tpu_custom_call.1} parent=35 // pred_fallthru
          _
        %s228 = smul.u32 8, %s23
        %p229 = scmp.lt.s32.totalorder %s228, 15
        %s230 = scalar_select %p229, %s228, 15
        %s231 = smul.addr %s230, 8
        %s232 = scalar_lea.vmem %s0, %s231
        %p233 = pneg %p52
        %p234 = pneg %p49
        %s235 = smul.u32 2, %s24
        %p236 = scmp.lt.s32.totalorder %s235, 1
        %s237 = scalar_select %p236, %s235, 1
        %s238 = smul.addr %s237, 8
        %s239 = scalar_lea.vmem %s1, %s238
        %p240 = pneg %p78
        %p241 = pneg %p75
        %s242 = smul.u32 2, %s24
        %p243 = scmp.lt.s32.totalorder %s242, 1
        %s244 = scalar_select %p243, %s242, 1
        %s245 = scalar_lea.vmem %s2, %s244
        %p246 = pneg %p104
        %p247 = pneg %p101
        %p248 = pneg %p130
        %p249 = pneg %p127
        %p250 = pneg %p156
        %p251 = pneg %p153
        %s252 = sand.u32 %s143, 1
        %s253 = scalar_lea.sflag [#allocation5], %s252
        %s254 = sand.u32 %s143, 1
        %s255 = smul.addr %s254, 64
        %s256 = scalar_lea.vmem [#allocation6], %s255
        %s257 = smul.u32 8, %s23
        %p258 = scmp.lt.s32.totalorder %s257, 15
        %s259 = scalar_select %p258, %s257, 15
        %s260 = smul.addr %s259, 8
        %s261 = scalar_lea.vmem %s0, %s260
        %s262 = smul.u32 8, %s23
        %s263 = smul.u32 2, %s24
        %p264 = scmp.lt.s32.totalorder %s263, 1
        %s265 = scalar_select %p264, %s263, 1
        %s266 = smul.addr %s265, 8
        %s267 = scalar_lea.vmem %s1, %s266
        %s268 = smul.u32 2, %s24
        %s269 = smul.u32 2, %s24
        %p270 = scmp.lt.s32.totalorder %s269, 1
        %s271 = scalar_select %p270, %s269, 1
        %s272 = scalar_lea.vmem %s2, %s271
        %s273 = smul.u32 2, %s24
        %s274 = smul.u32 32, %s24
        %s275 = smul.u32 8, %s23
        %p276 = scmp.eq.s32.totalorder %s24, 0
        // Predicated region
        $region41: #{tpu_custom_call.1} parent=35 // pred_check
          %p277 = pneg %p276
        $region42: #{tpu_custom_call.1} parent=35 // pred_check_branch
          %279 = sbr.rel (%p277) target = $region44
        $region43: #{tpu_custom_call.1} parent=35 // pred_region
          %280 = vst [vmem:[%s256] sm:$0xff] 0.0
          %281 = vst [vmem:[%s256 + $0x8] sm:$0xff] 0.0
          %282 = vst [vmem:[%s256 + $0x10] sm:$0xff] 0.0
          %283 = vst [vmem:[%s256 + $0x18] sm:$0xff] 0.0
          %284 = vst [vmem:[%s256 + $0x20] sm:$0xff] 0.0
          %285 = vst [vmem:[%s256 + $0x28] sm:$0xff] 0.0
          %286 = vst [vmem:[%s256 + $0x30] sm:$0xff] 0.0
          %287 = vst [vmem:[%s256 + $0x38] sm:$0xff] 0.0
          %v288 = vld [vmem:[%s261] sm:$0xff]
          %v289 = vld [vmem:[%s261 + $0x8] sm:$0xff]
          %v290 = vld [vmem:[%s261 + $0x10] sm:$0xff]
          %v291 = vld [vmem:[%s261 + $0x18] sm:$0xff]
          %v292 = vld [vmem:[%s261 + $0x20] sm:$0xff]
          %v293 = vld [vmem:[%s261 + $0x28] sm:$0xff]
          %v294 = vld [vmem:[%s261 + $0x30] sm:$0xff]
          %v295 = vld [vmem:[%s261 + $0x38] sm:$0xff]
          %v296 = vmul.f32 %v288, %v288
          %v297 = vmul.f32 %v289, %v289
          %v298 = vmul.f32 %v290, %v290
          %v299 = vmul.f32 %v291, %v291
          %v300 = vmul.f32 %v292, %v292
          %v301 = vmul.f32 %v293, %v293
          %v302 = vmul.f32 %v294, %v294
          %v303 = vmul.f32 %v295, %v295
          %vm304 = vcmask 261120
          %v305 = vsel %vm304, %v296, 0.0
          %306 = vadd.xlane.f32.xlu0 %v305
          %v307 = vpop.xlane.xlu0 %306
          %v308 = vsel %vm304, %v297, 0.0
          %309 = vadd.xlane.f32.xlu0 %v308
          %v310 = vpop.xlane.xlu0 %309
          %v311 = vsel %vm304, %v298, 0.0
          %312 = vadd.xlane.f32.xlu0 %v311
          %v313 = vpop.xlane.xlu0 %312
          %v314 = vsel %vm304, %v299, 0.0
          %315 = vadd.xlane.f32.xlu0 %v314
          %v316 = vpop.xlane.xlu0 %315
          %v317 = vsel %vm304, %v300, 0.0
          %318 = vadd.xlane.f32.xlu0 %v317
          %v319 = vpop.xlane.xlu0 %318
          %v320 = vsel %vm304, %v301, 0.0
          %321 = vadd.xlane.f32.xlu0 %v320
          %v322 = vpop.xlane.xlu0 %321
          %v323 = vsel %vm304, %v302, 0.0
          %324 = vadd.xlane.f32.xlu0 %v323
          %v325 = vpop.xlane.xlu0 %324
          %v326 = vsel %vm304, %v303, 0.0
          %327 = vadd.xlane.f32.xlu0 %v326
          %v328 = vpop.xlane.xlu0 %327
          %vm329 = vcmask 7168
          %330 = vst.msk [vmem:[#allocation2] sm:$0xff] %vm329, %v307
          %331 = vst.msk [vmem:[#allocation2 + $0x8] sm:$0xff] %vm329, %v310
          %332 = vst.msk [vmem:[#allocation2 + $0x10] sm:$0xff] %vm329, %v313
          %333 = vst.msk [vmem:[#allocation2 + $0x18] sm:$0xff] %vm329, %v316
          %334 = vst.msk [vmem:[#allocation2 + $0x20] sm:$0xff] %vm329, %v319
          %335 = vst.msk [vmem:[#allocation2 + $0x28] sm:$0xff] %vm329, %v322
          %336 = vst.msk [vmem:[#allocation2 + $0x30] sm:$0xff] %vm329, %v325
          %337 = vst.msk [vmem:[#allocation2 + $0x38] sm:$0xff] %vm329, %v328
        $region44: #{tpu_custom_call.1} parent=35 // pred_fallthru
          _
        %v338 = vld [vmem:[%s261] sm:$0xff]
        %v339 = vld [vmem:[%s261 + $0x8] sm:$0xff]
        %v340 = vld [vmem:[%s261 + $0x10] sm:$0xff]
        %v341 = vld [vmem:[%s261 + $0x18] sm:$0xff]
        %v342 = vld [vmem:[%s261 + $0x20] sm:$0xff]
        %v343 = vld [vmem:[%s261 + $0x28] sm:$0xff]
        %v344 = vld [vmem:[%s261 + $0x30] sm:$0xff]
        %v345 = vld [vmem:[%s261 + $0x38] sm:$0xff]
        %v346 = vld [vmem:[%s267] sm:$0xff]
        %v347 = vld [vmem:[%s267 + $0x8] sm:$0xff]
        %v348 = vld [vmem:[%s267 + $0x10] sm:$0xff]
        %v349 = vld [vmem:[%s267 + $0x18] sm:$0xff]
        %v350 = vld [vmem:[%s267 + $0x20] sm:$0xff]
        %v351 = vld [vmem:[%s267 + $0x28] sm:$0xff]
        %v352 = vld [vmem:[%s267 + $0x30] sm:$0xff]
        %v353 = vld [vmem:[%s267 + $0x38] sm:$0xff]
        %v354 = vld [vmem:[#allocation3] sm:$0xff]
        %v355 = vld [vmem:[#allocation3 + $0x8] sm:$0xff]
        %v356 = vld [vmem:[#allocation3 + $0x10] sm:$0xff]
        %v357 = vld [vmem:[#allocation3 + $0x18] sm:$0xff]
        %v358 = vld [vmem:[#allocation3 + $0x20] sm:$0xff]
        %v359 = vld [vmem:[#allocation3 + $0x28] sm:$0xff]
        %v360 = vld [vmem:[#allocation3 + $0x30] sm:$0xff]
        %v361 = vld [vmem:[#allocation3 + $0x38] sm:$0xff]
        %v362 = vld [vmem:[#allocation3 + $0x40] sm:$0xff]
        %v363 = vld [vmem:[#allocation3 + $0x48] sm:$0xff]
        %v364 = vld [vmem:[#allocation3 + $0x50] sm:$0xff]
        %v365 = vld [vmem:[#allocation3 + $0x58] sm:$0xff]
        %v366 = vld [vmem:[#allocation3 + $0x60] sm:$0xff]
        %v367 = vld [vmem:[#allocation3 + $0x68] sm:$0xff]
        %v368 = vld [vmem:[#allocation3 + $0x70] sm:$0xff]
        %v369 = vld [vmem:[#allocation3 + $0x78] sm:$0xff]
        %v370 = vld [vmem:[#allocation3 + $0x80] sm:$0xff]
        %v371 = vld [vmem:[#allocation3 + $0x88] sm:$0xff]
        %v372 = vld [vmem:[#allocation3 + $0x90] sm:$0xff]
        %v373 = vld [vmem:[#allocation3 + $0x98] sm:$0xff]
        %v374 = vld [vmem:[#allocation3 + $0xa0] sm:$0xff]
        %v375 = vld [vmem:[#allocation3 + $0xa8] sm:$0xff]
        %v376 = vld [vmem:[#allocation3 + $0xb0] sm:$0xff]
        %v377 = vld [vmem:[#allocation3 + $0xb8] sm:$0xff]
        %v378 = vld [vmem:[#allocation3 + $0xc0] sm:$0xff]
        %v379 = vld [vmem:[#allocation3 + $0xc8] sm:$0xff]
        %v380 = vld [vmem:[#allocation3 + $0xd0] sm:$0xff]
        %v381 = vld [vmem:[#allocation3 + $0xd8] sm:$0xff]
        %v382 = vld [vmem:[#allocation3 + $0xe0] sm:$0xff]
        %v383 = vld [vmem:[#allocation3 + $0xe8] sm:$0xff]
        %v384 = vld [vmem:[#allocation3 + $0xf0] sm:$0xff]
        %v385 = vld [vmem:[#allocation3 + $0xf8] sm:$0xff]
        %vm386 = vcmask 261120
        %v388 = vsel %vm386, %v338, 0
        %v391 = vsel %vm386, %v339, 0
        %v394 = vsel %vm386, %v340, 0
        %v397 = vsel %vm386, %v341, 0
        %v400 = vsel %vm386, %v342, 0
        %v403 = vsel %vm386, %v343, 0
        %v406 = vsel %vm386, %v344, 0
        %v409 = vsel %vm386, %v345, 0
        %411 = vmatprep.subr.mxu0 0.0
        %412 = vmatpush1.msra.mxu0 0.0
        %413 = vmatprep.subr.mxu0 0.0
        %414 = vmatpush1.msra.mxu0 0.0
        %415 = vmatprep.subr.mxu0 0.0
        %416 = vmatpush1.msra.mxu0 0.0
        %417 = vmatprep.subr.mxu0 0.0
        %418 = vmatpush1.msra.mxu0 0.0
        %419 = vmatprep.subr.mxu0 0.0
        %420 = vmatpush1.msra.mxu0 0.0
        %421 = vmatprep.subr.mxu0 0.0
        %422 = vmatpush1.msra.mxu0 0.0
        %423 = vmatprep.subr.mxu0 0.0
        %424 = vmatpush1.msra.mxu0 0.0
        %425 = vmatprep.subr.mxu0 0.0
        %426 = vmatpush1.msra.mxu0 0.0
        %427 = vmatprep.subr.mxu0 0.0
        %428 = vmatpush1.msra.mxu0 0.0
        %429 = vmatprep.subr.mxu0 0.0
        %430 = vmatpush1.msra.mxu0 0.0
        %431 = vmatprep.subr.mxu0 0.0
        %432 = vmatpush1.msra.mxu0 0.0
        %433 = vmatprep.subr.mxu0 0.0
        %434 = vmatpush1.msra.mxu0 0.0
        %435 = vmatprep.subr.mxu0 %v353
        %436 = vmatpush1.msra.mxu0 %v352
        %437 = vmatprep.subr.mxu0 %v351
        %438 = vmatpush1.msra.mxu0 %v350
        %439 = vmatprep.subr.mxu0 %v349
        %440 = vmatpush1.msra.mxu0 %v348
        %441 = vmatprep.subr.mxu0 %v347
        %442 = vmatpush1.msra.mxu0 %v346
        %443 = vmatprep.subr.mxu0 0.0
        %444 = vmatpush2.msra.mxu0 0.0
        %445 = vmatprep.subr.mxu0 0.0
        %446 = vmatpush2.msra.mxu0 0.0
        %447 = vmatprep.subr.mxu0 0.0
        %448 = vmatpush2.msra.mxu0 0.0
        %449 = vmatprep.subr.mxu0 0.0
        %450 = vmatpush2.msra.mxu0 0.0
        %451 = vmatprep.subr.mxu0 0.0
        %452 = vmatpush2.msra.mxu0 0.0
        %453 = vmatprep.subr.mxu0 0.0
        %454 = vmatpush2.msra.mxu0 0.0
        %455 = vmatprep.subr.mxu0 0.0
        %456 = vmatpush2.msra.mxu0 0.0
        %457 = vmatprep.subr.mxu0 0.0
        %458 = vmatpush2.msra.mxu0 0.0
        %459 = vmatprep.subr.mxu0 0.0
        %460 = vmatpush2.msra.mxu0 0.0
        %461 = vmatprep.subr.mxu0 0.0
        %462 = vmatpush2.msra.mxu0 0.0
        %463 = vmatprep.subr.mxu0 0.0
        %464 = vmatpush2.msra.mxu0 0.0
        %465 = vmatprep.subr.mxu0 0.0
        %466 = vmatpush2.msra.mxu0 0.0
        %467 = vmatprep.subr.mxu0 0.0
        %468 = vmatpush2.msra.mxu0 0.0
        %469 = vmatprep.subr.mxu0 0.0
        %470 = vmatpush2.msra.mxu0 0.0
        %471 = vmatprep.subr.mxu0 0.0
        %472 = vmatpush2.msra.mxu0 0.0
        %473 = vmatprep.subr.mxu0 0.0
        %474 = vmatpush2.msra.mxu0 0.0
        %475 = vmatprep.mubr.f32.mxu0 0.0
        %476 = vmatmul.mubr.f32.gmra.mxu0 %v388
        %v477 = vpop.f32.mrf.mxu0
        %v478 = vadd.f32 0.0, %v477
        %v479 = vpop.f32.mrf.mxu0
        %v480 = vadd.f32 0.0, %v479
        %481 = vmatprep.mubr.f32.mxu0 0.0
        %482 = vmatmul.mubr.f32.gmra.mxu0 %v391
        %v483 = vpop.f32.mrf.mxu0
        %v484 = vadd.f32 0.0, %v483
        %v485 = vpop.f32.mrf.mxu0
        %v486 = vadd.f32 0.0, %v485
        %487 = vmatprep.mubr.f32.mxu0 0.0
        %488 = vmatmul.mubr.f32.gmra.mxu0 %v394
        %v489 = vpop.f32.mrf.mxu0
        %v490 = vadd.f32 0.0, %v489
        %v491 = vpop.f32.mrf.mxu0
        %v492 = vadd.f32 0.0, %v491
        %493 = vmatprep.mubr.f32.mxu0 0.0
        %494 = vmatmul.mubr.f32.gmra.mxu0 %v397
        %v495 = vpop.f32.mrf.mxu0
        %v496 = vadd.f32 0.0, %v495
        %v497 = vpop.f32.mrf.mxu0
        %v498 = vadd.f32 0.0, %v497
        %499 = vmatprep.mubr.f32.mxu0 0.0
        %500 = vmatmul.mubr.f32.gmra.mxu0 %v400
        %v501 = vpop.f32.mrf.mxu0
        %v502 = vadd.f32 0.0, %v501
        %v503 = vpop.f32.mrf.mxu0
        %v504 = vadd.f32 0.0, %v503
        %505 = vmatprep.mubr.f32.mxu0 0.0
        %506 = vmatmul.mubr.f32.gmra.mxu0 %v403
        %v507 = vpop.f32.mrf.mxu0
        %v508 = vadd.f32 0.0, %v507
        %v509 = vpop.f32.mrf.mxu0
        %v510 = vadd.f32 0.0, %v509
        %511 = vmatprep.mubr.f32.mxu0 0.0
        %512 = vmatmul.mubr.f32.gmra.mxu0 %v406
        %v513 = vpop.f32.mrf.mxu0
        %v514 = vadd.f32 0.0, %v513
        %v515 = vpop.f32.mrf.mxu0
        %v516 = vadd.f32 0.0, %v515
        %517 = vmatprep.mubr.f32.mxu0 0.0
        %518 = vmatmul.mubr.f32.gmra.mxu0 %v409
        %v519 = vpop.f32.mrf.mxu0
        %v520 = vadd.f32 0.0, %v519
        %v521 = vpop.f32.mrf.mxu0
        %v522 = vadd.f32 0.0, %v521
        %523 = vdwg.mxu0
        %v524 = vld [vmem:[#allocation2] sm:$0xff]
        %v525 = vld [vmem:[#allocation2 + $0x8] sm:$0xff]
        %v526 = vld [vmem:[#allocation2 + $0x10] sm:$0xff]
        %v527 = vld [vmem:[#allocation2 + $0x18] sm:$0xff]
        %v528 = vld [vmem:[#allocation2 + $0x20] sm:$0xff]
        %v529 = vld [vmem:[#allocation2 + $0x28] sm:$0xff]
        %v530 = vld [vmem:[#allocation2 + $0x30] sm:$0xff]
        %v531 = vld [vmem:[#allocation2 + $0x38] sm:$0xff]
        %v532 = vld [vmem:[%s272] sm:$0x3]
        %534 = vset.pattern.permute.xlu0 0
        %535 = vperm.xlu0 %534, %v524
        %v536 = vpop.permute.xlu0 %535
        %539 = vset.pattern.permute.xlu0 0
        %540 = vperm.xlu0 %539, %v525
        %v541 = vpop.permute.xlu0 %540
        %544 = vset.pattern.permute.xlu0 0
        %545 = vperm.xlu0 %544, %v526
        %v546 = vpop.permute.xlu0 %545
        %549 = vset.pattern.permute.xlu0 0
        %550 = vperm.xlu0 %549, %v527
        %v551 = vpop.permute.xlu0 %550
        %554 = vset.pattern.permute.xlu0 0
        %555 = vperm.xlu0 %554, %v528
        %v556 = vpop.permute.xlu0 %555
        %559 = vset.pattern.permute.xlu0 0
        %560 = vperm.xlu0 %559, %v529
        %v561 = vpop.permute.xlu0 %560
        %564 = vset.pattern.permute.xlu0 0
        %565 = vperm.xlu0 %564, %v530
        %v566 = vpop.permute.xlu0 %565
        %569 = vset.pattern.permute.xlu0 0
        %570 = vperm.xlu0 %569, %v531
        %v571 = vpop.permute.xlu0 %570
        %v574 = vlaneseq
        %v575 = vshrl.u32 %v574, 7
        %v576 = vsub.s32 0, %v575
        %v577 = vrot.slane %v532, %v576
        %v578 = vlaneseq
        %v579 = vshrl.u32 %v578, 7
        %v580 = vsub.s32 1, %v579
        %v581 = vrot.slane %v532, %v580
        %v584 = vadd.f32 %v536, %v577
        %v585 = vadd.f32 %v536, %v581
        %v586 = vadd.f32 %v541, %v577
        %v587 = vadd.f32 %v541, %v581
        %v588 = vadd.f32 %v546, %v577
        %v589 = vadd.f32 %v546, %v581
        %v590 = vadd.f32 %v551, %v577
        %v591 = vadd.f32 %v551, %v581
        %v592 = vadd.f32 %v556, %v577
        %v593 = vadd.f32 %v556, %v581
        %v594 = vadd.f32 %v561, %v577
        %v595 = vadd.f32 %v561, %v581
        %v596 = vadd.f32 %v566, %v577
        %v597 = vadd.f32 %v566, %v581
        %v598 = vadd.f32 %v571, %v577
        %v599 = vadd.f32 %v571, %v581
        %v600 = vmul.f32 %v478, 2.0
        %v601 = vmul.f32 %v480, 2.0
        %v602 = vmul.f32 %v484, 2.0
        %v603 = vmul.f32 %v486, 2.0
        %v604 = vmul.f32 %v490, 2.0
        %v605 = vmul.f32 %v492, 2.0
        %v606 = vmul.f32 %v496, 2.0
        %v607 = vmul.f32 %v498, 2.0
        %v608 = vmul.f32 %v502, 2.0
        %v609 = vmul.f32 %v504, 2.0
        %v610 = vmul.f32 %v508, 2.0
        %v611 = vmul.f32 %v510, 2.0
        %v612 = vmul.f32 %v514, 2.0
        %v613 = vmul.f32 %v516, 2.0
        %v614 = vmul.f32 %v520, 2.0
        %v615 = vmul.f32 %v522, 2.0
        %v616 = vsub.f32 %v584, %v600
        %v617 = vsub.f32 %v585, %v601
        %v618 = vsub.f32 %v586, %v602
        %v619 = vsub.f32 %v587, %v603
        %v620 = vsub.f32 %v588, %v604
        %v621 = vsub.f32 %v589, %v605
        %v622 = vsub.f32 %v590, %v606
        %v623 = vsub.f32 %v591, %v607
        %v624 = vsub.f32 %v592, %v608
        %v625 = vsub.f32 %v593, %v609
        %v626 = vsub.f32 %v594, %v610
        %v627 = vsub.f32 %v595, %v611
        %v628 = vsub.f32 %v596, %v612
        %v629 = vsub.f32 %v597, %v613
        %v630 = vsub.f32 %v598, %v614
        %v631 = vsub.f32 %v599, %v615
        %v632 = vmax.f32 %v616, 0.0
        %v633 = vmax.f32 %v617, 0.0
        %v634 = vmax.f32 %v618, 0.0
        %v635 = vmax.f32 %v619, 0.0
        %v636 = vmax.f32 %v620, 0.0
        %v637 = vmax.f32 %v621, 0.0
        %v638 = vmax.f32 %v622, 0.0
        %v639 = vmax.f32 %v623, 0.0
        %v640 = vmax.f32 %v624, 0.0
        %v641 = vmax.f32 %v625, 0.0
        %v642 = vmax.f32 %v626, 0.0
        %v643 = vmax.f32 %v627, 0.0
        %v644 = vmax.f32 %v628, 0.0
        %v645 = vmax.f32 %v629, 0.0
        %v646 = vmax.f32 %v630, 0.0
        %v647 = vmax.f32 %v631, 0.0
        %v648 = vrsqrt.pop %v632
        %v649 = vmul.f32 %v632, %v648
        %vm650 = vcmp.eq.f32.partialorder %v632, inf
        %v651 = vsel %vm650, %v632, %v649
        %vm652 = vcmp.eq.f32.partialorder %v632, 0.0
        %v653 = vand.u32 %v632, 2147483648
        %v654 = vsel %vm652, %v653, %v651
        %v655 = vrsqrt.pop %v633
        %v656 = vmul.f32 %v633, %v655
        %vm657 = vcmp.eq.f32.partialorder %v633, inf
        %v658 = vsel %vm657, %v633, %v656
        %vm659 = vcmp.eq.f32.partialorder %v633, 0.0
        %v660 = vand.u32 %v633, 2147483648
        %v661 = vsel %vm659, %v660, %v658
        %v662 = vrsqrt.pop %v634
        %v663 = vmul.f32 %v634, %v662
        %vm664 = vcmp.eq.f32.partialorder %v634, inf
        %v665 = vsel %vm664, %v634, %v663
        %vm666 = vcmp.eq.f32.partialorder %v634, 0.0
        %v667 = vand.u32 %v634, 2147483648
        %v668 = vsel %vm666, %v667, %v665
        %v669 = vrsqrt.pop %v635
        %v670 = vmul.f32 %v635, %v669
        %vm671 = vcmp.eq.f32.partialorder %v635, inf
        %v672 = vsel %vm671, %v635, %v670
        %vm673 = vcmp.eq.f32.partialorder %v635, 0.0
        %v674 = vand.u32 %v635, 2147483648
        %v675 = vsel %vm673, %v674, %v672
        %v676 = vrsqrt.pop %v636
        %v677 = vmul.f32 %v636, %v676
        %vm678 = vcmp.eq.f32.partialorder %v636, inf
        %v679 = vsel %vm678, %v636, %v677
        %vm680 = vcmp.eq.f32.partialorder %v636, 0.0
        %v681 = vand.u32 %v636, 2147483648
        %v682 = vsel %vm680, %v681, %v679
        %v683 = vrsqrt.pop %v637
        %v684 = vmul.f32 %v637, %v683
        %vm685 = vcmp.eq.f32.partialorder %v637, inf
        %v686 = vsel %vm685, %v637, %v684
        %vm687 = vcmp.eq.f32.partialorder %v637, 0.0
        %v688 = vand.u32 %v637, 2147483648
        %v689 = vsel %vm687, %v688, %v686
        %v690 = vrsqrt.pop %v638
        %v691 = vmul.f32 %v638, %v690
        %vm692 = vcmp.eq.f32.partialorder %v638, inf
        %v693 = vsel %vm692, %v638, %v691
        %vm694 = vcmp.eq.f32.partialorder %v638, 0.0
        %v695 = vand.u32 %v638, 2147483648
        %v696 = vsel %vm694, %v695, %v693
        %v697 = vrsqrt.pop %v639
        %v698 = vmul.f32 %v639, %v697
        %vm699 = vcmp.eq.f32.partialorder %v639, inf
        %v700 = vsel %vm699, %v639, %v698
        %vm701 = vcmp.eq.f32.partialorder %v639, 0.0
        %v702 = vand.u32 %v639, 2147483648
        %v703 = vsel %vm701, %v702, %v700
        %v704 = vrsqrt.pop %v640
        %v705 = vmul.f32 %v640, %v704
        %vm706 = vcmp.eq.f32.partialorder %v640, inf
        %v707 = vsel %vm706, %v640, %v705
        %vm708 = vcmp.eq.f32.partialorder %v640, 0.0
        %v709 = vand.u32 %v640, 2147483648
        %v710 = vsel %vm708, %v709, %v707
        %v711 = vrsqrt.pop %v641
        %v712 = vmul.f32 %v641, %v711
        %vm713 = vcmp.eq.f32.partialorder %v641, inf
        %v714 = vsel %vm713, %v641, %v712
        %vm715 = vcmp.eq.f32.partialorder %v641, 0.0
        %v716 = vand.u32 %v641, 2147483648
        %v717 = vsel %vm715, %v716, %v714
        %v718 = vrsqrt.pop %v642
        %v719 = vmul.f32 %v642, %v718
        %vm720 = vcmp.eq.f32.partialorder %v642, inf
        %v721 = vsel %vm720, %v642, %v719
        %vm722 = vcmp.eq.f32.partialorder %v642, 0.0
        %v723 = vand.u32 %v642, 2147483648
        %v724 = vsel %vm722, %v723, %v721
        %v725 = vrsqrt.pop %v643
        %v726 = vmul.f32 %v643, %v725
        %vm727 = vcmp.eq.f32.partialorder %v643, inf
        %v728 = vsel %vm727, %v643, %v726
        %vm729 = vcmp.eq.f32.partialorder %v643, 0.0
        %v730 = vand.u32 %v643, 2147483648
        %v731 = vsel %vm729, %v730, %v728
        %v732 = vrsqrt.pop %v644
        %v733 = vmul.f32 %v644, %v732
        %vm734 = vcmp.eq.f32.partialorder %v644, inf
        %v735 = vsel %vm734, %v644, %v733
        %vm736 = vcmp.eq.f32.partialorder %v644, 0.0
        %v737 = vand.u32 %v644, 2147483648
        %v738 = vsel %vm736, %v737, %v735
        %v739 = vrsqrt.pop %v645
        %v740 = vmul.f32 %v645, %v739
        %vm741 = vcmp.eq.f32.partialorder %v645, inf
        %v742 = vsel %vm741, %v645, %v740
        %vm743 = vcmp.eq.f32.partialorder %v645, 0.0
        %v744 = vand.u32 %v645, 2147483648
        %v745 = vsel %vm743, %v744, %v742
        %v746 = vrsqrt.pop %v646
        %v747 = vmul.f32 %v646, %v746
        %vm748 = vcmp.eq.f32.partialorder %v646, inf
        %v749 = vsel %vm748, %v646, %v747
        %vm750 = vcmp.eq.f32.partialorder %v646, 0.0
        %v751 = vand.u32 %v646, 2147483648
        %v752 = vsel %vm750, %v751, %v749
        %v753 = vrsqrt.pop %v647
        %v754 = vmul.f32 %v647, %v753
        %vm755 = vcmp.eq.f32.partialorder %v647, inf
        %v756 = vsel %vm755, %v647, %v754
        %vm757 = vcmp.eq.f32.partialorder %v647, 0.0
        %v758 = vand.u32 %v647, 2147483648
        %v759 = vsel %vm757, %v758, %v756
        %v760 = vmul.f32 %v654, -0.1
        %v761 = vmul.f32 %v661, -0.1
        %v762 = vmul.f32 %v668, -0.1
        %v763 = vmul.f32 %v675, -0.1
        %v764 = vmul.f32 %v682, -0.1
        %v765 = vmul.f32 %v689, -0.1
        %v766 = vmul.f32 %v696, -0.1
        %v767 = vmul.f32 %v703, -0.1
        %v768 = vmul.f32 %v710, -0.1
        %v769 = vmul.f32 %v717, -0.1
        %v770 = vmul.f32 %v724, -0.1
        %v771 = vmul.f32 %v731, -0.1
        %v772 = vmul.f32 %v738, -0.1
        %v773 = vmul.f32 %v745, -0.1
        %v774 = vmul.f32 %v752, -0.1
        %v775 = vmul.f32 %v759, -0.1
        %v776 = vmul.f32 %v760, 1.442695
        %v777 = vpow.pop %v776
        %v778 = vmul.f32 %v761, 1.442695
        %v779 = vpow.pop %v778
        %v780 = vmul.f32 %v762, 1.442695
        %v781 = vpow.pop %v780
        %v782 = vmul.f32 %v763, 1.442695
        %v783 = vpow.pop %v782
        %v784 = vmul.f32 %v764, 1.442695
        %v785 = vpow.pop %v784
        %v786 = vmul.f32 %v765, 1.442695
        %v787 = vpow.pop %v786
        %v788 = vmul.f32 %v766, 1.442695
        %v789 = vpow.pop %v788
        %v790 = vmul.f32 %v767, 1.442695
        %v791 = vpow.pop %v790
        %v792 = vmul.f32 %v768, 1.442695
        %v793 = vpow.pop %v792
        %v794 = vmul.f32 %v769, 1.442695
        %v795 = vpow.pop %v794
        %v796 = vmul.f32 %v770, 1.442695
        %v797 = vpow.pop %v796
        %v798 = vmul.f32 %v771, 1.442695
        %v799 = vpow.pop %v798
        %v800 = vmul.f32 %v772, 1.442695
        %v801 = vpow.pop %v800
        %v802 = vmul.f32 %v773, 1.442695
        %v803 = vpow.pop %v802
        %v804 = vmul.f32 %v774, 1.442695
        %v805 = vpow.pop %v804
        %v806 = vmul.f32 %v775, 1.442695
        %v807 = vpow.pop %v806
        %v808 = vld [vmem:[%s256] sm:$0xff]
        %v809 = vld [vmem:[%s256 + $0x8] sm:$0xff]
        %v810 = vld [vmem:[%s256 + $0x10] sm:$0xff]
        %v811 = vld [vmem:[%s256 + $0x18] sm:$0xff]
        %v812 = vld [vmem:[%s256 + $0x20] sm:$0xff]
        %v813 = vld [vmem:[%s256 + $0x28] sm:$0xff]
        %v814 = vld [vmem:[%s256 + $0x30] sm:$0xff]
        %v815 = vld [vmem:[%s256 + $0x38] sm:$0xff]
        %816 = vmatprep.subr.mxu0 0.0
        %817 = vmatpush1.msra.mxu0 %v369
        %818 = vmatprep.subr.mxu0 0.0
        %819 = vmatpush1.msra.mxu0 %v368
        %820 = vmatprep.subr.mxu0 0.0
        %821 = vmatpush1.msra.mxu0 %v367
        %822 = vmatprep.subr.mxu0 0.0
        %823 = vmatpush1.msra.mxu0 %v366
        %824 = vmatprep.subr.mxu0 0.0
        %825 = vmatpush1.msra.mxu0 %v365
        %826 = vmatprep.subr.mxu0 0.0
        %827 = vmatpush1.msra.mxu0 %v364
        %828 = vmatprep.subr.mxu0 0.0
        %829 = vmatpush1.msra.mxu0 %v363
        %830 = vmatprep.subr.mxu0 0.0
        %831 = vmatpush1.msra.mxu0 %v362
        %832 = vmatprep.subr.mxu0 0.0
        %833 = vmatpush1.msra.mxu0 %v361
        %834 = vmatprep.subr.mxu0 0.0
        %835 = vmatpush1.msra.mxu0 %v360
        %836 = vmatprep.subr.mxu0 0.0
        %837 = vmatpush1.msra.mxu0 %v359
        %838 = vmatprep.subr.mxu0 0.0
        %839 = vmatpush1.msra.mxu0 %v358
        %840 = vmatprep.subr.mxu0 0.0
        %841 = vmatpush1.msra.mxu0 %v357
        %842 = vmatprep.subr.mxu0 0.0
        %843 = vmatpush1.msra.mxu0 %v356
        %844 = vmatprep.subr.mxu0 0.0
        %845 = vmatpush1.msra.mxu0 %v355
        %846 = vmatprep.subr.mxu0 0.0
        %847 = vmatpush1.msra.mxu0 %v354
        %848 = vmatprep.subr.mxu0 0.0
        %849 = vmatpush2.msra.mxu0 %v385
        %850 = vmatprep.subr.mxu0 0.0
        %851 = vmatpush2.msra.mxu0 %v384
        %852 = vmatprep.subr.mxu0 0.0
        %853 = vmatpush2.msra.mxu0 %v383
        %854 = vmatprep.subr.mxu0 0.0
        %855 = vmatpush2.msra.mxu0 %v382
        %856 = vmatprep.subr.mxu0 0.0
        %857 = vmatpush2.msra.mxu0 %v381
        %858 = vmatprep.subr.mxu0 0.0
        %859 = vmatpush2.msra.mxu0 %v380
        %860 = vmatprep.subr.mxu0 0.0
        %861 = vmatpush2.msra.mxu0 %v379
        %862 = vmatprep.subr.mxu0 0.0
        %863 = vmatpush2.msra.mxu0 %v378
        %864 = vmatprep.subr.mxu0 0.0
        %865 = vmatpush2.msra.mxu0 %v377
        %866 = vmatprep.subr.mxu0 0.0
        %867 = vmatpush2.msra.mxu0 %v376
        %868 = vmatprep.subr.mxu0 0.0
        %869 = vmatpush2.msra.mxu0 %v375
        %870 = vmatprep.subr.mxu0 0.0
        %871 = vmatpush2.msra.mxu0 %v374
        %872 = vmatprep.subr.mxu0 0.0
        %873 = vmatpush2.msra.mxu0 %v373
        %874 = vmatprep.subr.mxu0 0.0
        %875 = vmatpush2.msra.mxu0 %v372
        %876 = vmatprep.subr.mxu0 0.0
        %877 = vmatpush2.msra.mxu0 %v371
        %878 = vmatprep.subr.mxu0 0.0
        %879 = vmatpush2.msra.mxu0 %v370
        %880 = vmatprep.mubr.f32.mxu0 %v779
        %881 = vmatmul.mubr.f32.gmra.mxu0 %v777
        %v882 = vpop.f32.mrf.mxu0
        %v883 = vadd.f32 0.0, %v882
        %v884 = vpop.f32.mrf.mxu0
        %885 = vmatprep.mubr.f32.mxu0 %v783
        %886 = vmatmul.mubr.f32.gmra.mxu0 %v781
        %v887 = vpop.f32.mrf.mxu0
        %v888 = vadd.f32 0.0, %v887
        %v889 = vpop.f32.mrf.mxu0
        %890 = vmatprep.mubr.f32.mxu0 %v787
        %891 = vmatmul.mubr.f32.gmra.mxu0 %v785
        %v892 = vpop.f32.mrf.mxu0
        %v893 = vadd.f32 0.0, %v892
        %v894 = vpop.f32.mrf.mxu0
        %895 = vmatprep.mubr.f32.mxu0 %v791
        %896 = vmatmul.mubr.f32.gmra.mxu0 %v789
        %v897 = vpop.f32.mrf.mxu0
        %v898 = vadd.f32 0.0, %v897
        %v899 = vpop.f32.mrf.mxu0
        %900 = vmatprep.mubr.f32.mxu0 %v795
        %901 = vmatmul.mubr.f32.gmra.mxu0 %v793
        %v902 = vpop.f32.mrf.mxu0
        %v903 = vadd.f32 0.0, %v902
        %v904 = vpop.f32.mrf.mxu0
        %905 = vmatprep.mubr.f32.mxu0 %v799
        %906 = vmatmul.mubr.f32.gmra.mxu0 %v797
        %v907 = vpop.f32.mrf.mxu0
        %v908 = vadd.f32 0.0, %v907
        %v909 = vpop.f32.mrf.mxu0
        %910 = vmatprep.mubr.f32.mxu0 %v803
        %911 = vmatmul.mubr.f32.gmra.mxu0 %v801
        %v912 = vpop.f32.mrf.mxu0
        %v913 = vadd.f32 0.0, %v912
        %v914 = vpop.f32.mrf.mxu0
        %915 = vmatprep.mubr.f32.mxu0 %v807
        %916 = vmatmul.mubr.f32.gmra.mxu0 %v805
        %v917 = vpop.f32.mrf.mxu0
        %v918 = vadd.f32 0.0, %v917
        %v919 = vpop.f32.mrf.mxu0
        %920 = vdwg.mxu0
        %v921 = vadd.f32 %v808, %v883
        %v922 = vadd.f32 %v809, %v888
        %v923 = vadd.f32 %v810, %v893
        %v924 = vadd.f32 %v811, %v898
        %v925 = vadd.f32 %v812, %v903
        %v926 = vadd.f32 %v813, %v908
        %v927 = vadd.f32 %v814, %v913
        %v928 = vadd.f32 %v815, %v918
        %929 = vst [vmem:[%s256] sm:$0xff] %v921
        %930 = vst [vmem:[%s256 + $0x8] sm:$0xff] %v922
        %931 = vst [vmem:[%s256 + $0x10] sm:$0xff] %v923
        %932 = vst [vmem:[%s256 + $0x18] sm:$0xff] %v924
        %933 = vst [vmem:[%s256 + $0x20] sm:$0xff] %v925
        %934 = vst [vmem:[%s256 + $0x28] sm:$0xff] %v926
        %935 = vst [vmem:[%s256 + $0x30] sm:$0xff] %v927
        %936 = vst [vmem:[%s256 + $0x38] sm:$0xff] %v928
        %s937 = sand.u32 %s143, 1
        %s938 = scalar_lea.sflag [#allocation5], %s937
        %s939 = sand.u32 %s143, 1
        %s940 = smul.addr %s939, 64
        %s941 = scalar_lea.vmem [#allocation6], %s940
        // Predicated region
        $region45: #{tpu_custom_call.1} parent=35 // pred_check
          %p942 = pneg %p153
        $region46: #{tpu_custom_call.1} parent=35 // pred_check_branch
          %944 = sbr.rel (%p942) target = $region48
        $region47: #{tpu_custom_call.1} parent=35 // pred_region
          %s945 = smul.u32 8, %s23
          %s947 = ssub.s32 1024, 1024
          %948 = vsyncadd %s938, %s947
          %s949 = smul.addr %s945, 128
          %s950 = scalar_lea.hbm %s4, %s949
          %s951 = sshll.u32 %s941, 4
          %s952 = int_to_ptr.vmem [resolvable:$true] %s951
          %957 = dma.vmem_to_hbm [thread:$0]  %s952, 1024, %s950, %s938, 128, 128, 8
        $region48: #{tpu_custom_call.1} parent=35 // pred_fallthru
          _
      $region36: #{tpu_custom_call.1} parent=5 // pred_fallthru
        _
      %p958 = scmp.le.s32.totalorder 2, %s14
      // Predicated region
      $region49: #{tpu_custom_call.1} parent=5 // pred_check
        %p959 = pneg %p958
      $region50: #{tpu_custom_call.1} parent=5 // pred_check_branch
        %961 = sbr.rel (%p959) target = $region52
      $region51: #{tpu_custom_call.1} parent=5 // pred_region
        %s962 = ssub.s32 %s14, 2
        // Predicated region
        $region53: #{tpu_custom_call.1} parent=51 // pred_check
          %p963 = pneg %p159
        $region54: #{tpu_custom_call.1} parent=51 // pred_check_branch
          %965 = sbr.rel (%p963) target = $region56
        $region55: #{tpu_custom_call.1} parent=51 // pred_region
          %s966 = sand.u32 %s144, 1
          %s967 = scalar_lea.sflag [#allocation5], %s966
          %s968 = sand.u32 %s144, 1
          %s969 = smul.addr %s968, 64
          %s970 = scalar_lea.vmem [#allocation6], %s969
          %971 = dma.done %s967, 1024
        $region56: #{tpu_custom_call.1} parent=51 // pred_fallthru
          _
      $region52: #{tpu_custom_call.1} parent=5 // pred_fallthru
        _
    $region6: #{tpu_custom_call.1} parent=1 // loop_footer
      %s18 = sadd.s32 1, %s14
    $region7: #{tpu_custom_call.1} parent=1 // loop_footer_branch
      %13 = sbr.rel target = $region3
    $region8: #{tpu_custom_call.1} parent=1 // loop_exit
      _
    %972 = vsyncpa [#allocation4], 1
    %s973 = scalar_lea.sflag [#allocation4], 1
    %974 = vsyncpa %s973, 1
    %975 = vsyncpa [#allocation5], 1
    %s976 = scalar_lea.sflag [#allocation5], 1
    %977 = vsyncpa %s976, 1

</llo_original>
